<compile_context>
chip_gen: v5e
topology: v5e:2x2
jax: 0.10.0
libtpu: 0.0.40
codegen_flags: <defaults>
</compile_context>

<pallas_src>
import functools

import jax
import jax.numpy as jnp
from jax import lax
from jax.experimental import pallas as pl
from jax.experimental.pallas import tpu as pltpu

EPS = 1e-5
LEAKY_SLOPE = 0.2


def _round_up(x, m):
    return ((x + m - 1) // m) * m


def _cdiv(a, b):
    return (a + b - 1) // b


def _tpu_vmem_bytes():
    """Physical VMEM per TensorCore (generation aware), conservative fallback."""
    try:
        info = pltpu.get_tpu_info()
        for attr in ("vmem_capacity_bytes", "vmem_bytes", "vmem_size_bytes"):
            v = getattr(info, attr, None)
            if v:
                return int(v)
    except Exception:
        pass
    return 64 * 1024 * 1024            # v7x per-TC size; safe lower bound


_VMEM_PHYS = _tpu_vmem_bytes()
if _VMEM_PHYS >= 100 * 1024 * 1024:    # v5e / v6e: 128 MiB per TensorCore
    _VMEM_LIMIT = 96 * 1024 * 1024
    _TILE_BUDGET = 64 * 1024 * 1024
else:                                  # v7x: 64 MiB per TensorCore
    _VMEM_LIMIT = 44 * 1024 * 1024
    _TILE_BUDGET = 24 * 1024 * 1024


def _balanced_rows(p_valid, tp_max):
    """Balanced row tiling with minimal padding: n tiles of tp rows (tp % 16 == 0)."""
    tp_max = max(16, (tp_max // 16) * 16)
    n = max(1, _cdiv(p_valid, tp_max))
    tp = _round_up(_cdiv(p_valid, n), 16)
    return tp, n * tp


def _conv_tiles(p_valid, k_dim, c_pad):
    """Pick (row tile, padded rows, K tile, padded K, num K tiles) for the conv kernel."""
    # K tiling: stream the weights as (tk, c_pad) blocks; keep the double-buffered
    # weight block a modest fraction of the budget so the row tile stays large.
    tk_cap = min(2048, max(128, ((_TILE_BUDGET // 4) // (4 * c_pad)) // 128 * 128))
    nk = max(1, _cdiv(k_dim, tk_cap))
    tk = _round_up(_cdiv(k_dim, nk), 128)
    k_pad = nk * tk
    # Row tile from the remaining (double-buffered) working set.
    fixed = 2 * tk * c_pad * 2 + 8 * c_pad * 4             # weight blocks + small vectors
    per_row = 2 * (tk * 2) + 2 * (c_pad * 2) + c_pad * 4   # bf16 patches/out (x2) + f32 acc
    budget = max(_TILE_BUDGET - fixed, 16 * per_row)
    tp_max = max(16, min(1024, budget // per_row))
    tp, p_pad = _balanced_rows(p_valid, tp_max)
    return tp, p_pad, tk, k_pad, nk


def _bn_rows(p_pad, tp_conv, c_pad, n_big_refs):
    """Row tile for the elementwise BN kernels: a multiple of the conv row tile that
    divides p_pad, sized independently of the conv kernel's (K-dominated) working set."""
    per_row = n_big_refs * 2 * c_pad * 4          # generous: f32, double-buffered
    cap = max(16, min(2048, _TILE_BUDGET // per_row))
    n = p_pad // tp_conv
    best = tp_conv
    for m in range(1, n + 1):
        if n % m == 0 and tp_conv * m <= cap:
            best = tp_conv * m
    return best


# --------------------------------------------------------------------------------------
# Pallas kernels
# --------------------------------------------------------------------------------------
def conv_stats_kernel(p_ref, w_ref, b_ref, out_ref, sum_ref, ssq_ref, acc_ref, *,
                      p_valid, tp, need_mask):
    """K-tiled im2col matmul (bf16 x bf16 -> f32 MXU accumulator) + conv bias.
    At the last K step: store the conv activation in bf16 and emit per-row-tile partial
    per-channel sum / sum-of-squares (padded rows masked only on tiles that have them)."""
    @pl.when(pl.program_id(1) == 0)
    def _():
        acc_ref[...] = jnp.zeros_like(acc_ref)

    acc_ref[...] += jnp.dot(p_ref[...], w_ref[...], preferred_element_type=jnp.float32)

    @pl.when(pl.program_id(1) == pl.num_programs(1) - 1)
    def _():
        acc = acc_ref[...] + b_ref[...]              # conv bias, broadcast over rows
        out_ref[...] = acc.astype(out_ref.dtype)     # bf16 activation writeback

        def _emit_stats(v):
            sum_ref[...] = jnp.broadcast_to(jnp.sum(v, axis=0), sum_ref.shape)
            ssq_ref[...] = jnp.broadcast_to(jnp.sum(v * v, axis=0), ssq_ref.shape)

        if need_mask:
            has_pad = (pl.program_id(0) + 1) * tp > p_valid

            @pl.when(has_pad)
            def _():
                row = (lax.broadcasted_iota(jnp.int32, acc.shape, 0)
                       + pl.program_id(0) * tp)
                _emit_stats(jnp.where(row < p_valid, acc, 0.0))

            @pl.when(jnp.logical_not(has_pad))
            def _():
                _emit_stats(acc)
        else:
            _emit_stats(acc)


def bn_lrelu_kernel(x_ref, sc_ref, sh_ref, o_ref, *, slope):
    """y = x*scale + shift (scale/shift pre-folded host-side) then LeakyReLU(slope)."""
    y = x_ref[...].astype(jnp.float32) * sc_ref[...] + sh_ref[...]
    o_ref[...] = jnp.where(y >= 0.0, y, slope * y).astype(o_ref.dtype)


def bn_lrelu_add_relu_kernel(x_ref, sc_ref, sh_ref, r_ref, o_ref, *, slope):
    """Fused: BN affine + LeakyReLU + residual add + ReLU (one HBM pass over conv2)."""
    y = x_ref[...].astype(jnp.float32) * sc_ref[...] + sh_ref[...]
    y = jnp.where(y >= 0.0, y, slope * y)
    o_ref[...] = jnp.maximum(y + r_ref[...].astype(jnp.float32), 0.0).astype(o_ref.dtype)


# --------------------------------------------------------------------------------------
# Wrappers around pallas_call
# --------------------------------------------------------------------------------------
def conv_matmul_stats(patches, wmat, bias, p_valid, tp, tk):
    p_pad, k_pad = patches.shape
    c_pad = wmat.shape[1]
    n_tiles = p_pad // tp
    nk = k_pad // tk
    kern = functools.partial(conv_stats_kernel, p_valid=p_valid, tp=tp,
                             need_mask=(p_pad != p_valid))
    flops = 2 * p_pad * k_pad * c_pad
    bytes_accessed = (patches.nbytes + n_tiles * (wmat.nbytes + bias.nbytes)
                      + p_pad * c_pad * 2 + 2 * n_tiles * c_pad * 4)
    return pl.pallas_call(
        kern,
        out_shape=(jax.ShapeDtypeStruct((p_pad, c_pad), jnp.bfloat16),
                   jax.ShapeDtypeStruct((n_tiles, 1, c_pad), jnp.float32),
                   jax.ShapeDtypeStruct((n_tiles, 1, c_pad), jnp.float32)),
        grid=(n_tiles, nk),
        in_specs=[pl.BlockSpec((tp, tk), lambda i, k: (i, k)),
                  pl.BlockSpec((tk, c_pad), lambda i, k: (k, 0)),
                  pl.BlockSpec((1, c_pad), lambda i, k: (0, 0))],
        out_specs=(pl.BlockSpec((tp, c_pad), lambda i, k: (i, 0)),
                   pl.BlockSpec((1, 1, c_pad), lambda i, k: (i, 0, 0)),
                   pl.BlockSpec((1, 1, c_pad), lambda i, k: (i, 0, 0))),
        scratch_shapes=[pltpu.VMEM((tp, c_pad), jnp.float32)],
        compiler_params=pltpu.CompilerParams(
            dimension_semantics=("parallel", "arbitrary"),
            vmem_limit_bytes=_VMEM_LIMIT),
        cost_estimate=pl.CostEstimate(flops=flops, transcendentals=0,
                                      bytes_accessed=bytes_accessed),
    )(patches, wmat, bias)


def bn_leaky_relu(x, scale, shift, tp, out_dtype=jnp.bfloat16):
    p_pad, c_pad = x.shape
    kern = functools.partial(bn_lrelu_kernel, slope=LEAKY_SLOPE)
    return pl.pallas_call(
        kern,
        out_shape=jax.ShapeDtypeStruct((p_pad, c_pad), out_dtype),
        grid=(p_pad // tp,),
        in_specs=[pl.BlockSpec((tp, c_pad), lambda i: (i, 0)),
                  pl.BlockSpec((1, c_pad), lambda i: (0, 0)),
                  pl.BlockSpec((1, c_pad), lambda i: (0, 0))],
        out_specs=pl.BlockSpec((tp, c_pad), lambda i: (i, 0)),
        compiler_params=pltpu.CompilerParams(
            dimension_semantics=("parallel",),
            vmem_limit_bytes=_VMEM_LIMIT),
    )(x, scale, shift)


def bn_leaky_relu_add_relu(x, scale, shift, res, tp, out_dtype=jnp.float32):
    p_pad, c_pad = x.shape
    kern = functools.partial(bn_lrelu_add_relu_kernel, slope=LEAKY_SLOPE)
    return pl.pallas_call(
        kern,
        out_shape=jax.ShapeDtypeStruct((p_pad, c_pad), out_dtype),
        grid=(p_pad // tp,),
        in_specs=[pl.BlockSpec((tp, c_pad), lambda i: (i, 0)),
                  pl.BlockSpec((1, c_pad), lambda i: (0, 0)),
                  pl.BlockSpec((1, c_pad), lambda i: (0, 0)),
                  pl.BlockSpec((tp, c_pad), lambda i: (i, 0))],
        out_specs=pl.BlockSpec((tp, c_pad), lambda i: (i, 0)),
        compiler_params=pltpu.CompilerParams(
            dimension_semantics=("parallel",),
            vmem_limit_bytes=_VMEM_LIMIT),
    )(x, scale, shift, res)


# --------------------------------------------------------------------------------------
# Conv3d(k=4, s=2, p=1) glue: channels-last im2col in plain JAX (layout only, no math)
# --------------------------------------------------------------------------------------
def im2col_3d(x_cl, k=4, s=2, p=1):
    """Channels-last (N, D, H, W, C) im2col; column order (c, kd, kh, kw) to match
    W.reshape(c_out, -1).T for OIDHW weights."""
    N, D, H, W, C = x_cl.shape
    xp = jnp.pad(x_cl, ((0, 0), (p, p), (p, p), (p, p), (0, 0)))
    Do = (D + 2 * p - k) // s + 1
    Ho = (H + 2 * p - k) // s + 1
    Wo = (W + 2 * p - k) // s + 1
    slabs = []
    for kd in range(k):
        for kh in range(k):
            for kw in range(k):
                slabs.append(
                    xp[:, kd:kd + s * Do:s, kh:kh + s * Ho:s, kw:kw + s * Wo:s, :])
    pt = jnp.stack(slabs, axis=-1)                      # (N, Do, Ho, Wo, C, k^3)
    return pt.reshape(N * Do * Ho * Wo, C * k * k * k), (N, Do, Ho, Wo)


def conv_block_forward(x_cl, W, b, gamma, beta, residual_2d=None):
    """Conv3d(k=4,s=2,p=1) -> BatchNorm3d (batch stats) -> LeakyReLU(0.2), optionally
    fused with (+ residual, ReLU).  Channels-last in/out: (N,D,H,W,C) -> (N,Do,Ho,Wo,Co);
    bf16 output for the intermediate block, f32 for the fused residual tail."""
    c_out = W.shape[0]
    c_pad = _round_up(c_out, 128)                       # lane-dense output width

    patches, (n, do, ho, wo) = im2col_3d(x_cl.astype(jnp.bfloat16))
    p_valid, k_dim = patches.shape

    tp, p_pad, tk, k_pad, nk = _conv_tiles(p_valid, k_dim, c_pad)

    patches = jnp.pad(patches, ((0, p_pad - p_valid), (0, k_pad - k_dim)))
    wmat = jnp.pad(W.reshape(c_out, -1).T,
                   ((0, k_pad - k_dim), (0, c_pad - c_out))).astype(jnp.bfloat16)
    bias = jnp.pad(b.reshape(1, -1), ((0, 0), (0, c_pad - c_out))).astype(jnp.float32)

    conv_out, partial_sum, partial_ssq = conv_matmul_stats(
        patches, wmat, bias, p_valid, tp, tk)

    # Tiny O(n_tiles * C) combine of the per-tile partial stats, then fold the whole
    # BatchNorm affine into (scale, shift) host-side so the elementwise kernels are FMAs.
    count = float(p_valid)
    s = jnp.sum(partial_sum[:, 0, :], axis=0)
    ss = jnp.sum(partial_ssq[:, 0, :], axis=0)
    mean = s / count
    var = jnp.maximum(ss / count - mean * mean, 0.0)    # E[x^2]-mean^2 cancellation guard
    gamma_p = jnp.pad(gamma, (0, c_pad - c_out), constant_values=1.0).astype(jnp.float32)
    beta_p = jnp.pad(beta, (0, c_pad - c_out)).astype(jnp.float32)
    scale = gamma_p * lax.rsqrt(var + EPS)
    shift = beta_p - mean * scale
    scale = scale.reshape(1, c_pad)
    shift = shift.reshape(1, c_pad)

    if residual_2d is None:
        tp_bn = _bn_rows(p_pad, tp, c_pad, n_big_refs=2)
        y = bn_leaky_relu(conv_out, scale, shift, tp_bn)                      # bf16
    else:
        res = jnp.pad(residual_2d.astype(jnp.bfloat16),
                      ((0, p_pad - residual_2d.shape[0]),
                       (0, c_pad - residual_2d.shape[1])))
        tp_bn = _bn_rows(p_pad, tp, c_pad, n_big_refs=3)
        y = bn_leaky_relu_add_relu(conv_out, scale, shift, res, tp_bn)        # f32

    return y[:p_valid, :c_out].reshape(n, do, ho, wo, c_out)


def residual_block_forward(x, params):
    (W1, b1, g1, be1), (W2, b2, g2, be2) = params
    x_cl = jnp.transpose(x, (0, 2, 3, 4, 1))            # NCDHW -> NDHWC (channels-last)
    out1 = conv_block_forward(x_cl, W1, b1, g1, be1)    # bf16, channels-last
    # TODO(synk): self.downsample is referenced in forward() but never defined in
    # __init__ (AttributeError in PyTorch), and residual/out shapes can never match after
    # two stride-2 convs; use a deterministic stride-4 spatial subsample of x as a
    # stand-in (requires in_channels == out_channels).
    residual = x_cl[:, ::4, ::4, ::4, :]
    res_2d = residual.reshape(-1, residual.shape[-1])
    # TODO(synk): BatchNorm running_mean / running_var (training-mode side effects) are
    # not produced; only the forward activation is computed.
    out2 = conv_block_forward(out1, W2, b2, g2, be2, residual_2d=res_2d)      # f32
    return jnp.transpose(out2, (0, 4, 1, 2, 3))         # back to NCDHW


# --------------------------------------------------------------------------------------
# Pure-JAX references for correctness checking
# --------------------------------------------------------------------------------------
def conv_block_ref(x, W, b, gamma, beta, conv_dtype=jnp.float32,
                   store_dtype=jnp.float32):
    y = lax.conv_general_dilated(x.astype(conv_dtype), W.astype(conv_dtype),
                                 window_strides=(2, 2, 2),
                                 padding=((1, 1), (1, 1), (1, 1)),
                                 dimension_numbers=('NCDHW', 'OIDHW', 'NCDHW'),
                                 preferred_element_type=jnp.float32)
    y = y + b.reshape(1, -1, 1, 1, 1)
    mean = jnp.mean(y, axis=(0, 2, 3, 4), keepdims=True)        # stats from f32 conv out
    var = jnp.mean((y - mean) ** 2, axis=(0, 2, 3, 4), keepdims=True)
    y = y.astype(store_dtype).astype(jnp.float32)               # activation storage dtype
    y = (y - mean) * lax.rsqrt(var + EPS) * gamma.reshape(1, -1, 1, 1, 1) \
        + beta.reshape(1, -1, 1, 1, 1)
    return jnp.where(y >= 0, y, LEAKY_SLOPE * y)


def residual_block_ref(x, params, conv_dtype=jnp.float32, store_dtype=jnp.float32):
    (W1, b1, g1, be1), (W2, b2, g2, be2) = params
    h = conv_block_ref(x, W1, b1, g1, be1, conv_dtype, store_dtype)
    h = h.astype(store_dtype).astype(jnp.float32)               # block-1 output storage
    out = conv_block_ref(h, W2, b2, g2, be2, conv_dtype, store_dtype)
    res = x[:, :, ::4, ::4, ::4].astype(store_dtype).astype(jnp.float32)
    return jnp.maximum(out + res, 0.0)


# --------------------------------------------------------------------------------------
if __name__ == "__main__":
    N, C_in, C_out, D = 2, 4, 4, 8   # small 3-D volume: x is NCDHW = (2, 4, 8, 8, 8)
    key = jax.random.PRNGKey(0)
    ks = jax.random.split(key, 9)

    x = jax.random.normal(ks[0], (N, C_in, D, D, D), dtype=jnp.float32)

    W1 = 0.05 * jax.random.normal(ks[1], (C_out, C_in, 4, 4, 4), dtype=jnp.float32)
    b1 = 0.05 * jax.random.normal(ks[2], (C_out,), dtype=jnp.float32)
    g1 = 1.0 + 0.1 * jax.random.normal(ks[3], (C_out,), dtype=jnp.float32)
    be1 = 0.1 * jax.random.normal(ks[4], (C_out,), dtype=jnp.float32)

    W2 = 0.05 * jax.random.normal(ks[5], (C_out, C_out, 4, 4, 4), dtype=jnp.float32)
    b2 = 0.05 * jax.random.normal(ks[6], (C_out,), dtype=jnp.float32)
    g2 = 1.0 + 0.1 * jax.random.normal(ks[7], (C_out,), dtype=jnp.float32)
    be2 = 0.1 * jax.random.normal(ks[8], (C_out,), dtype=jnp.float32)

    params = ((W1, b1, g1, be1), (W2, b2, g2, be2))

    out = residual_block_forward(x, params)
    out = jax.block_until_ready(out)
    assert out.shape == (N, C_out, D // 4, D // 4, D // 4)

    # Tight check against a reference that applies the same bf16 quantization points
    # (bf16 conv inputs/weights, bf16 activation storage, f32 batch statistics).
    ref_bf16 = residual_block_ref(x, params, conv_dtype=jnp.bfloat16,
                                  store_dtype=jnp.bfloat16)
    err_b = float(jnp.max(jnp.abs(out - ref_bf16)))
    assert jnp.allclose(out, ref_bf16, atol=5e-3, rtol=5e-3), err_b

    # Loose check against the full-f32 reference (bounds total bf16 quantization error).
    ref_f32 = residual_block_ref(x, params, conv_dtype=jnp.float32,
                                 store_dtype=jnp.float32)
    err_f = float(jnp.max(jnp.abs(out - ref_f32)))
    assert jnp.allclose(out, ref_f32, atol=1e-1, rtol=1e-1), err_f

    print("KERNEL_OK")
</pallas_src>

<mosaic_0001>
module attributes {stable_mosaic.version = 11 : i64} {
  func.func @conv_stats_kernel(%arg0: i32, %arg1: i32, %arg2: memref<128x256xbf16, #tpu.memory_space<vmem>>, %arg3: memref<256x128xbf16, #tpu.memory_space<vmem>>, %arg4: memref<1x128xf32, #tpu.memory_space<vmem>>, %arg5: memref<128x128xbf16, #tpu.memory_space<vmem>>, %arg6: memref<1x1x128xf32, #tpu.memory_space<vmem>>, %arg7: memref<1x1x128xf32, #tpu.memory_space<vmem>>, %arg8: memref<128x128xf32, #tpu.memory_space<vmem>>) attributes {dimension_semantics = [#tpu.dimension_semantics<parallel>, #tpu.dimension_semantics<arbitrary>], iteration_bounds = array<i64: 1, 1>, scalar_prefetch = 0 : i64, scratch_operands = 1 : i64, tpu.core_type = #tpu.core_type<tc>, window_params = [{transform_indices = @transform_0, window_bounds = array<i64: 128, 256>}, {transform_indices = @transform_1, window_bounds = array<i64: 256, 128>}, {pipeline_mode = #tpu.pipeline_mode<synchronous>, transform_indices = @transform_2, window_bounds = array<i64: 1, 128>}, {transform_indices = @transform_3, window_bounds = array<i64: 128, 128>}, {transform_indices = @transform_4, window_bounds = array<i64: 1, 1, 128>}, {transform_indices = @transform_5, window_bounds = array<i64: 1, 1, 128>}]} {
    %c0_i32 = arith.constant 0 : i32
    %0 = arith.cmpi eq, %arg1, %c0_i32 : i32
    %1 = arith.extui %0 : i1 to i32
    %c0_i32_0 = arith.constant 0 : i32
    %2 = arith.cmpi ne, %1, %c0_i32_0 : i32
    scf.if %2 {
      %cst_10 = arith.constant 0.000000e+00 : f32
      %12 = vector.broadcast %cst_10 : f32 to vector<128x128xf32>
      %c0_11 = arith.constant 0 : index
      %c0_12 = arith.constant 0 : index
      %13 = vector.load %arg8[%c0_11, %c0_12] : memref<128x128xf32, #tpu.memory_space<vmem>>, vector<128x128xf32>
      tpu.vector_store %arg8[%c0_11, %c0_12], %12 {strides = array<i32>} : memref<128x128xf32, #tpu.memory_space<vmem>>, vector<128x128xf32>,
    } else {
    }
    %c0 = arith.constant 0 : index
    %c0_1 = arith.constant 0 : index
    %3 = vector.load %arg8[%c0, %c0_1] : memref<128x128xf32, #tpu.memory_space<vmem>>, vector<128x128xf32>
    %c0_2 = arith.constant 0 : index
    %c0_3 = arith.constant 0 : index
    %4 = vector.load %arg2[%c0_2, %c0_3] : memref<128x256xbf16, #tpu.memory_space<vmem>>, vector<128x256xbf16>
    %c0_4 = arith.constant 0 : index
    %c0_5 = arith.constant 0 : index
    %5 = vector.load %arg3[%c0_4, %c0_5] : memref<256x128xbf16, #tpu.memory_space<vmem>>, vector<256x128xbf16>
    %cst = arith.constant dense<0.000000e+00> : vector<128x128xf32>
    %6 = tpu.matmul %4, %5, %cst {dimension_numbers = #tpu.dot_dimension_numbers<[1], [0], [0], [1], [0, 0, 1, 1], [], []>} : vector<128x256xbf16>, vector<256x128xbf16>, vector<128x128xf32> -> vector<128x128xf32>
    %7 = arith.addf %3, %6 : vector<128x128xf32>
    %c0_6 = arith.constant 0 : index
    %c0_7 = arith.constant 0 : index
    %8 = vector.load %arg8[%c0_6, %c0_7] : memref<128x128xf32, #tpu.memory_space<vmem>>, vector<128x128xf32>
    tpu.vector_store %arg8[%c0_6, %c0_7], %7 {strides = array<i32>} : memref<128x128xf32, #tpu.memory_space<vmem>>, vector<128x128xf32>,
    %c0_i32_8 = arith.constant 0 : i32
    %9 = arith.cmpi eq, %arg1, %c0_i32_8 : i32
    %10 = arith.extui %9 : i1 to i32
    %c0_i32_9 = arith.constant 0 : i32
    %11 = arith.cmpi ne, %10, %c0_i32_9 : i32
    scf.if %11 {
      %c0_10 = arith.constant 0 : index
      %c0_11 = arith.constant 0 : index
      %12 = vector.load %arg8[%c0_10, %c0_11] : memref<128x128xf32, #tpu.memory_space<vmem>>, vector<128x128xf32>
      %c0_12 = arith.constant 0 : index
      %c0_13 = arith.constant 0 : index
      %13 = vector.load %arg4[%c0_12, %c0_13] : memref<1x128xf32, #tpu.memory_space<vmem>>, vector<1x128xf32>
      %14 = vector.broadcast %13 : vector<1x128xf32> to vector<128x128xf32>
      %15 = arith.addf %12, %14 : vector<128x128xf32>
      %16 = arith.truncf %15 : vector<128x128xf32> to vector<128x128xbf16>
      %c0_14 = arith.constant 0 : index
      %c0_15 = arith.constant 0 : index
      %17 = vector.load %arg5[%c0_14, %c0_15] : memref<128x128xbf16, #tpu.memory_space<vmem>>, vector<128x128xbf16>
      tpu.vector_store %arg5[%c0_14, %c0_15], %16 {strides = array<i32>} : memref<128x128xbf16, #tpu.memory_space<vmem>>, vector<128x128xbf16>,
      %cst_16 = arith.constant dense<0.000000e+00> : vector<128xf32>
      %18 = vector.multi_reduction <add>, %15, %cst_16 [0] : vector<128x128xf32> to vector<128xf32>
      %19 = vector.shape_cast %18 : vector<128xf32> to vector<1x1x128xf32>
      %c0_17 = arith.constant 0 : index
      %c0_18 = arith.constant 0 : index
      %c0_19 = arith.constant 0 : index
      %20 = vector.load %arg6[%c0_17, %c0_18, %c0_19] : memref<1x1x128xf32, #tpu.memory_space<vmem>>, vector<1x1x128xf32>
      tpu.vector_store %arg6[%c0_17, %c0_18, %c0_19], %19 {strides = array<i32>} : memref<1x1x128xf32, #tpu.memory_space<vmem>>, vector<1x1x128xf32>,
      %21 = arith.mulf %15, %15 : vector<128x128xf32>
      %cst_20 = arith.constant dense<0.000000e+00> : vector<128xf32>
      %22 = vector.multi_reduction <add>, %21, %cst_20 [0] : vector<128x128xf32> to vector<128xf32>
      %23 = vector.shape_cast %22 : vector<128xf32> to vector<1x1x128xf32>
      %c0_21 = arith.constant 0 : index
      %c0_22 = arith.constant 0 : index
      %c0_23 = arith.constant 0 : index
      %24 = vector.load %arg7[%c0_21, %c0_22, %c0_23] : memref<1x1x128xf32, #tpu.memory_space<vmem>>, vector<1x1x128xf32>
      tpu.vector_store %arg7[%c0_21, %c0_22, %c0_23], %23 {strides = array<i32>} : memref<1x1x128xf32, #tpu.memory_space<vmem>>, vector<1x1x128xf32>,
    } else {
    }
    return
  }
  func.func @transform_0(%arg0: i32, %arg1: i32) -> (i32, i32) {
    %c0_i32 = arith.constant 0 : i32
    return %arg0, %arg1 : i32, i32
  }
  func.func @transform_1(%arg0: i32, %arg1: i32) -> (i32, i32) {
    %c0_i32 = arith.constant 0 : i32
    %c0_i32_0 = arith.constant 0 : i32
    return %arg1, %c0_i32 : i32, i32
  }
  func.func @transform_2(%arg0: i32, %arg1: i32) -> (i32, i32) {
    %c0_i32 = arith.constant 0 : i32
    %c0_i32_0 = arith.constant 0 : i32
    %c0_i32_1 = arith.constant 0 : i32
    return %c0_i32, %c0_i32_0 : i32, i32
  }
  func.func @transform_3(%arg0: i32, %arg1: i32) -> (i32, i32) {
    %c0_i32 = arith.constant 0 : i32
    %c0_i32_0 = arith.constant 0 : i32
    return %arg0, %c0_i32 : i32, i32
  }
  func.func @transform_4(%arg0: i32, %arg1: i32) -> (i32, i32, i32) {
    %c0_i32 = arith.constant 0 : i32
    %c0_i32_0 = arith.constant 0 : i32
    %c0_i32_1 = arith.constant 0 : i32
    return %arg0, %c0_i32, %c0_i32_0 : i32, i32, i32
  }
  func.func @transform_5(%arg0: i32, %arg1: i32) -> (i32, i32, i32) {
    %c0_i32 = arith.constant 0 : i32
    %c0_i32_0 = arith.constant 0 : i32
    %c0_i32_1 = arith.constant 0 : i32
    return %arg0, %c0_i32, %c0_i32_0 : i32, i32, i32
  }
}

</mosaic_0001>

<llo_original>
// kernel: tpu_custom_call.1
$region0: #{tpu_custom_call.1}
  #allocation0 [shape = 'u32[]', space=smem, size = 0x4, offset = 0x4, fixed_abs, tag = 'smem constant byte address 0x4 - core index']
  #allocation1 [shape = 'u32[72,128]{1,0:T(1,128)}', space=vmem, size = 0x9000, scoped, tag = 'internal scratch']
  #allocation2 [shape = 'f32[128,128]{1,0:T(8,128)}', space=vmem, size = 0x10000, scoped, tag = 'scratch operand']
  %s0 = inlined_call_operand.hbm [shape: bf16[128,256], index: 0, kind: input, shape index: {}]
  %s1 = inlined_call_operand.hbm [shape: bf16[256,128], index: 1, kind: input, shape index: {}]
  %s2 = inlined_call_operand.vmem [shape: f32[1,128], index: 2, kind: input, shape index: {}]
  %s3 = inlined_call_operand.hbm [shape: bf16[128,128], index: 3, kind: output, shape index: {0}]
  %s4 = inlined_call_operand.hbm [shape: f32[1,1,128], index: 4, kind: output, shape index: {1}]
  %s5 = inlined_call_operand.hbm [shape: f32[1,1,128], index: 5, kind: output, shape index: {2}]
  %6 = xla_tuple %s3, %s4, %s5
  %s7 = sld [smem:[#allocation0]]
  $region54: #{tpu_custom_call.1} parent=0
    _
  %s9 = ssub.s32 1, %s7
  %s10 = scalar_select 0, %s9, %s7
  $region1: #{tpu_custom_call.1} parent=0
    #allocation3 [shape = 'u8[65536]{0}', space=vmem, size = 0x10000, scoped, tag = 'input window, operand 0, single buffered']
    #allocation4 [shape = 's32[1]{0}', space=sflag, size = 0x4, scoped, tag = 'scoped memory for tpu_custom_call.1']
    #allocation5 [shape = 's32[1]{0}', space=sflag, size = 0x4, scoped, tag = 'scoped memory for tpu_custom_call.1']
    #allocation6 [shape = 'u8[65536]{0}', space=vmem, size = 0x10000, scoped, tag = 'input window, operand 1, single buffered']
    #allocation7 [shape = 's32[1]{0}', space=sflag, size = 0x4, scoped, tag = 'scoped memory for tpu_custom_call.1']
    #allocation8 [shape = 'u8[32768]{0}', space=vmem, size = 0x8000, scoped, tag = 'output window, operand 0, single buffered']
    #allocation9 [shape = 'u8[512]{0}', space=vmem, size = 0x400, scoped, tag = 'output window, operand 1, single buffered']
    #allocation10 [shape = 's32[1]{0}', space=sflag, size = 0x4, scoped, tag = 'scoped memory for tpu_custom_call.1']
    #allocation11 [shape = 'u8[512]{0}', space=vmem, size = 0x400, scoped, tag = 'output window, operand 2, single buffered']
    %11 = vsyncpa [#allocation4], 0
    %12 = vsyncpa [#allocation7], 0
    %13 = vsyncpa [#allocation5], 0
    %14 = vsyncpa [#allocation10], 0
    // Predicated region
    $region2: #{tpu_custom_call.1} parent=1 // pred_check
      _
    $region3: #{tpu_custom_call.1} parent=1 // pred_check_branch
      %16 = sbr.rel (0) target = $region5
    $region4: #{tpu_custom_call.1} parent=1 // pred_region
      %18 = vsyncadd [#allocation4], 0
      %s19 = sshll.u32 %s0, 4
      %s20 = int_to_ptr.hbm [resolvable:$true] %s19
      %s21 = sshll.u32 [#allocation3], 4
      %s22 = int_to_ptr.vmem [resolvable:$true] %s21
      %27 = dma.hbm_to_vmem [thread:$0]  %s20, 2048, %s22, [#allocation4], 128, 128, 8
    $region5: #{tpu_custom_call.1} parent=1 // pred_fallthru
      _
    // Predicated region
    $region6: #{tpu_custom_call.1} parent=1 // pred_check
      _
    $region7: #{tpu_custom_call.1} parent=1 // pred_check_branch
      %29 = sbr.rel (0) target = $region9
    $region8: #{tpu_custom_call.1} parent=1 // pred_region
      %31 = vsyncadd [#allocation7], 0
      %s32 = sshll.u32 %s1, 4
      %s33 = int_to_ptr.hbm [resolvable:$true] %s32
      %s34 = sshll.u32 [#allocation6], 4
      %s35 = int_to_ptr.vmem [resolvable:$true] %s34
      %40 = dma.hbm_to_vmem [thread:$0]  %s33, 2048, %s35, [#allocation7], 64, 64, 4
    $region9: #{tpu_custom_call.1} parent=1 // pred_fallthru
      _
    // Predicated region
    $region10: #{tpu_custom_call.1} parent=1 // pred_check
      _
    $region11: #{tpu_custom_call.1} parent=1 // pred_check_branch
      %42 = sbr.rel (0) target = $region13
    $region12: #{tpu_custom_call.1} parent=1 // pred_region
      _
    $region13: #{tpu_custom_call.1} parent=1 // pred_fallthru
      _
    // Predicated region
    $region14: #{tpu_custom_call.1} parent=1 // pred_check
      _
    $region15: #{tpu_custom_call.1} parent=1 // pred_check_branch
      %44 = sbr.rel (0) target = $region17
    $region16: #{tpu_custom_call.1} parent=1 // pred_region
      %46 = dma.done [#allocation4], 2048
    $region17: #{tpu_custom_call.1} parent=1 // pred_fallthru
      _
    // Predicated region
    $region18: #{tpu_custom_call.1} parent=1 // pred_check
      _
    $region19: #{tpu_custom_call.1} parent=1 // pred_check_branch
      %48 = sbr.rel (0) target = $region21
    $region20: #{tpu_custom_call.1} parent=1 // pred_region
      %50 = dma.done [#allocation7], 2048
    $region21: #{tpu_custom_call.1} parent=1 // pred_fallthru
      _
    %p51 = scmp.eq.s32.totalorder 0, 0
    // Predicated region
    $region22: #{tpu_custom_call.1} parent=1 // pred_check
      %p52 = pneg %p51
    $region23: #{tpu_custom_call.1} parent=1 // pred_check_branch
      %54 = sbr.rel (%p52) target = $region25
    $region24: #{tpu_custom_call.1} parent=1 // pred_region
      %55 = vst [vmem:[#allocation2] sm:$0xff] 0.0
      %56 = vst [vmem:[#allocation2 + $0x8] sm:$0xff] 0.0
      %57 = vst [vmem:[#allocation2 + $0x10] sm:$0xff] 0.0
      %58 = vst [vmem:[#allocation2 + $0x18] sm:$0xff] 0.0
      %59 = vst [vmem:[#allocation2 + $0x20] sm:$0xff] 0.0
      %60 = vst [vmem:[#allocation2 + $0x28] sm:$0xff] 0.0
      %61 = vst [vmem:[#allocation2 + $0x30] sm:$0xff] 0.0
      %62 = vst [vmem:[#allocation2 + $0x38] sm:$0xff] 0.0
      %63 = vst [vmem:[#allocation2 + $0x40] sm:$0xff] 0.0
      %64 = vst [vmem:[#allocation2 + $0x48] sm:$0xff] 0.0
      %65 = vst [vmem:[#allocation2 + $0x50] sm:$0xff] 0.0
      %66 = vst [vmem:[#allocation2 + $0x58] sm:$0xff] 0.0
      %67 = vst [vmem:[#allocation2 + $0x60] sm:$0xff] 0.0
      %68 = vst [vmem:[#allocation2 + $0x68] sm:$0xff] 0.0
      %69 = vst [vmem:[#allocation2 + $0x70] sm:$0xff] 0.0
      %70 = vst [vmem:[#allocation2 + $0x78] sm:$0xff] 0.0
    $region25: #{tpu_custom_call.1} parent=1 // pred_fallthru
      _
    %v71 = vld [vmem:[#allocation2] sm:$0xff]
    %v72 = vld [vmem:[#allocation2 + $0x8] sm:$0xff]
    %v73 = vld [vmem:[#allocation2 + $0x10] sm:$0xff]
    %v74 = vld [vmem:[#allocation2 + $0x18] sm:$0xff]
    %v75 = vld [vmem:[#allocation2 + $0x20] sm:$0xff]
    %v76 = vld [vmem:[#allocation2 + $0x28] sm:$0xff]
    %v77 = vld [vmem:[#allocation2 + $0x30] sm:$0xff]
    %v78 = vld [vmem:[#allocation2 + $0x38] sm:$0xff]
    %v79 = vld [vmem:[#allocation2 + $0x40] sm:$0xff]
    %v80 = vld [vmem:[#allocation2 + $0x48] sm:$0xff]
    %v81 = vld [vmem:[#allocation2 + $0x50] sm:$0xff]
    %v82 = vld [vmem:[#allocation2 + $0x58] sm:$0xff]
    %v83 = vld [vmem:[#allocation2 + $0x60] sm:$0xff]
    %v84 = vld [vmem:[#allocation2 + $0x68] sm:$0xff]
    %v85 = vld [vmem:[#allocation2 + $0x70] sm:$0xff]
    %v86 = vld [vmem:[#allocation2 + $0x78] sm:$0xff]
    %v87 = vld [vmem:[#allocation3] sm:$0xff]
    %v88 = vld [vmem:[#allocation3 + $0x8] sm:$0xff]
    %v89 = vld [vmem:[#allocation3 + $0x10] sm:$0xff]
    %v90 = vld [vmem:[#allocation3 + $0x18] sm:$0xff]
    %v91 = vld [vmem:[#allocation3 + $0x20] sm:$0xff]
    %v92 = vld [vmem:[#allocation3 + $0x28] sm:$0xff]
    %v93 = vld [vmem:[#allocation3 + $0x30] sm:$0xff]
    %v94 = vld [vmem:[#allocation3 + $0x38] sm:$0xff]
    %v95 = vld [vmem:[#allocation3 + $0x40] sm:$0xff]
    %v96 = vld [vmem:[#allocation3 + $0x48] sm:$0xff]
    %v97 = vld [vmem:[#allocation3 + $0x50] sm:$0xff]
    %v98 = vld [vmem:[#allocation3 + $0x58] sm:$0xff]
    %v99 = vld [vmem:[#allocation3 + $0x60] sm:$0xff]
    %v100 = vld [vmem:[#allocation3 + $0x68] sm:$0xff]
    %v101 = vld [vmem:[#allocation3 + $0x70] sm:$0xff]
    %v102 = vld [vmem:[#allocation3 + $0x78] sm:$0xff]
    %v103 = vld [vmem:[#allocation6] sm:$0xf]
    %v104 = vld [vmem:[#allocation6 + $0x4] sm:$0xf]
    %v105 = vld [vmem:[#allocation6 + $0x8] sm:$0xf]
    %v106 = vld [vmem:[#allocation6 + $0xc] sm:$0xf]
    %v107 = vld [vmem:[#allocation6 + $0x10] sm:$0xf]
    %v108 = vld [vmem:[#allocation6 + $0x14] sm:$0xf]
    %v109 = vld [vmem:[#allocation6 + $0x18] sm:$0xf]
    %v110 = vld [vmem:[#allocation6 + $0x1c] sm:$0xf]
    %v111 = vld [vmem:[#allocation6 + $0x20] sm:$0xf]
    %v112 = vld [vmem:[#allocation6 + $0x24] sm:$0xf]
    %v113 = vld [vmem:[#allocation6 + $0x28] sm:$0xf]
    %v114 = vld [vmem:[#allocation6 + $0x2c] sm:$0xf]
    %v115 = vld [vmem:[#allocation6 + $0x30] sm:$0xf]
    %v116 = vld [vmem:[#allocation6 + $0x34] sm:$0xf]
    %v117 = vld [vmem:[#allocation6 + $0x38] sm:$0xf]
    %v118 = vld [vmem:[#allocation6 + $0x3c] sm:$0xf]
    %v119 = vld [vmem:[#allocation6 + $0x40] sm:$0xf]
    %v120 = vld [vmem:[#allocation6 + $0x44] sm:$0xf]
    %v121 = vld [vmem:[#allocation6 + $0x48] sm:$0xf]
    %v122 = vld [vmem:[#allocation6 + $0x4c] sm:$0xf]
    %v123 = vld [vmem:[#allocation6 + $0x50] sm:$0xf]
    %v124 = vld [vmem:[#allocation6 + $0x54] sm:$0xf]
    %v125 = vld [vmem:[#allocation6 + $0x58] sm:$0xf]
    %v126 = vld [vmem:[#allocation6 + $0x5c] sm:$0xf]
    %v127 = vld [vmem:[#allocation6 + $0x60] sm:$0xf]
    %v128 = vld [vmem:[#allocation6 + $0x64] sm:$0xf]
    %v129 = vld [vmem:[#allocation6 + $0x68] sm:$0xf]
    %v130 = vld [vmem:[#allocation6 + $0x6c] sm:$0xf]
    %v131 = vld [vmem:[#allocation6 + $0x70] sm:$0xf]
    %v132 = vld [vmem:[#allocation6 + $0x74] sm:$0xf]
    %v133 = vld [vmem:[#allocation6 + $0x78] sm:$0xf]
    %v134 = vld [vmem:[#allocation6 + $0x7c] sm:$0xf]
    %v151 = vunpack.c.l.b16 %v87
    %v152 = vunpack.c.h.b16 %v87
    %v153 = vunpack.c.l.b16 %v88
    %v154 = vunpack.c.h.b16 %v88
    %v155 = vunpack.c.l.b16 %v89
    %v156 = vunpack.c.h.b16 %v89
    %v157 = vunpack.c.l.b16 %v90
    %v158 = vunpack.c.h.b16 %v90
    %v159 = vunpack.c.l.b16 %v91
    %v160 = vunpack.c.h.b16 %v91
    %v161 = vunpack.c.l.b16 %v92
    %v162 = vunpack.c.h.b16 %v92
    %v163 = vunpack.c.l.b16 %v93
    %v164 = vunpack.c.h.b16 %v93
    %v165 = vunpack.c.l.b16 %v94
    %v166 = vunpack.c.h.b16 %v94
    %v167 = vunpack.c.l.b16 %v95
    %v168 = vunpack.c.h.b16 %v95
    %v169 = vunpack.c.l.b16 %v96
    %v170 = vunpack.c.h.b16 %v96
    %v171 = vunpack.c.l.b16 %v97
    %v172 = vunpack.c.h.b16 %v97
    %v173 = vunpack.c.l.b16 %v98
    %v174 = vunpack.c.h.b16 %v98
    %v175 = vunpack.c.l.b16 %v99
    %v176 = vunpack.c.h.b16 %v99
    %v177 = vunpack.c.l.b16 %v100
    %v178 = vunpack.c.h.b16 %v100
    %v179 = vunpack.c.l.b16 %v101
    %v180 = vunpack.c.h.b16 %v101
    %v181 = vunpack.c.l.b16 %v102
    %v182 = vunpack.c.h.b16 %v102
    %v183 = vpack.c.b16 %v153, %v151
    %v184 = vpack.c.b16 %v154, %v152
    %v185 = vpack.c.b16 %v157, %v155
    %v186 = vpack.c.b16 %v158, %v156
    %v187 = vpack.c.b16 %v161, %v159
    %v188 = vpack.c.b16 %v162, %v160
    %v189 = vpack.c.b16 %v165, %v163
    %v190 = vpack.c.b16 %v166, %v164
    %v191 = vpack.c.b16 %v169, %v167
    %v192 = vpack.c.b16 %v170, %v168
    %v193 = vpack.c.b16 %v173, %v171
    %v194 = vpack.c.b16 %v174, %v172
    %v195 = vpack.c.b16 %v177, %v175
    %v196 = vpack.c.b16 %v178, %v176
    %v197 = vpack.c.b16 %v181, %v179
    %v198 = vpack.c.b16 %v182, %v180
    %v247 = vunpack.c.l.b16 %v103
    %v248 = vunpack.c.l.b16 %v104
    %v249 = vunpack.c.l.b16 %v105
    %v250 = vunpack.c.l.b16 %v106
    %v251 = vunpack.c.l.b16 %v107
    %v252 = vunpack.c.l.b16 %v108
    %v253 = vunpack.c.l.b16 %v109
    %v254 = vunpack.c.l.b16 %v110
    %v255 = vunpack.c.l.b16 %v111
    %v256 = vunpack.c.l.b16 %v112
    %v257 = vunpack.c.l.b16 %v113
    %v258 = vunpack.c.l.b16 %v114
    %v259 = vunpack.c.l.b16 %v115
    %v260 = vunpack.c.l.b16 %v116
    %v261 = vunpack.c.l.b16 %v117
    %v262 = vunpack.c.l.b16 %v118
    %v263 = vunpack.c.l.b16 %v119
    %v264 = vunpack.c.l.b16 %v120
    %v265 = vunpack.c.l.b16 %v121
    %v266 = vunpack.c.l.b16 %v122
    %v267 = vunpack.c.l.b16 %v123
    %v268 = vunpack.c.l.b16 %v124
    %v269 = vunpack.c.l.b16 %v125
    %v270 = vunpack.c.l.b16 %v126
    %v271 = vunpack.c.l.b16 %v127
    %v272 = vunpack.c.l.b16 %v128
    %v273 = vunpack.c.l.b16 %v129
    %v274 = vunpack.c.l.b16 %v130
    %v275 = vunpack.c.l.b16 %v131
    %v276 = vunpack.c.l.b16 %v132
    %v277 = vunpack.c.l.b16 %v133
    %v278 = vunpack.c.l.b16 %v134
    %v279 = vpack.c.b16 %v248, %v247
    %v280 = vpack.c.b16 %v250, %v249
    %v281 = vpack.c.b16 %v252, %v251
    %v282 = vpack.c.b16 %v254, %v253
    %v283 = vpack.c.b16 %v256, %v255
    %v284 = vpack.c.b16 %v258, %v257
    %v285 = vpack.c.b16 %v260, %v259
    %v286 = vpack.c.b16 %v262, %v261
    %v287 = vpack.c.b16 %v264, %v263
    %v288 = vpack.c.b16 %v266, %v265
    %v289 = vpack.c.b16 %v268, %v267
    %v290 = vpack.c.b16 %v270, %v269
    %v291 = vpack.c.b16 %v272, %v271
    %v292 = vpack.c.b16 %v274, %v273
    %v293 = vpack.c.b16 %v276, %v275
    %v294 = vpack.c.b16 %v278, %v277
    %311 = vmatpush.bf16.msra.mxu0 %v286
    %312 = vmatpush.bf16.msra.mxu0 %v285
    %313 = vmatpush.bf16.msra.mxu0 %v284
    %314 = vmatpush.bf16.msra.mxu0 %v283
    %315 = vmatpush.bf16.msra.mxu0 %v282
    %316 = vmatpush.bf16.msra.mxu0 %v281
    %317 = vmatpush.bf16.msra.mxu0 %v280
    %318 = vmatpush.bf16.msra.mxu0 %v279
    %319 = vmatmul.bf16.gmra.mxu0 %v183
    %v320 = vpop.f32.mrf.mxu0
    %v321 = vadd.f32 0.0, %v320
    %v322 = vpop.f32.mrf.mxu0
    %v323 = vadd.f32 0.0, %v322
    %324 = vmatmul.bf16.gmra.mxu0 %v185
    %v325 = vpop.f32.mrf.mxu0
    %v326 = vadd.f32 0.0, %v325
    %v327 = vpop.f32.mrf.mxu0
    %v328 = vadd.f32 0.0, %v327
    %329 = vmatmul.bf16.gmra.mxu0 %v187
    %v330 = vpop.f32.mrf.mxu0
    %v331 = vadd.f32 0.0, %v330
    %v332 = vpop.f32.mrf.mxu0
    %v333 = vadd.f32 0.0, %v332
    %334 = vmatmul.bf16.gmra.mxu0 %v189
    %v335 = vpop.f32.mrf.mxu0
    %v336 = vadd.f32 0.0, %v335
    %v337 = vpop.f32.mrf.mxu0
    %v338 = vadd.f32 0.0, %v337
    %339 = vmatmul.bf16.gmra.mxu0 %v191
    %v340 = vpop.f32.mrf.mxu0
    %v341 = vadd.f32 0.0, %v340
    %v342 = vpop.f32.mrf.mxu0
    %v343 = vadd.f32 0.0, %v342
    %344 = vmatmul.bf16.gmra.mxu0 %v193
    %v345 = vpop.f32.mrf.mxu0
    %v346 = vadd.f32 0.0, %v345
    %v347 = vpop.f32.mrf.mxu0
    %v348 = vadd.f32 0.0, %v347
    %349 = vmatmul.bf16.gmra.mxu0 %v195
    %v350 = vpop.f32.mrf.mxu0
    %v351 = vadd.f32 0.0, %v350
    %v352 = vpop.f32.mrf.mxu0
    %v353 = vadd.f32 0.0, %v352
    %354 = vmatmul.bf16.gmra.mxu0 %v197
    %v355 = vpop.f32.mrf.mxu0
    %v356 = vadd.f32 0.0, %v355
    %v357 = vpop.f32.mrf.mxu0
    %v358 = vadd.f32 0.0, %v357
    %359 = vdwg.mxu0
    %360 = vmatpush.bf16.msra.mxu0 %v294
    %361 = vmatpush.bf16.msra.mxu0 %v293
    %362 = vmatpush.bf16.msra.mxu0 %v292
    %363 = vmatpush.bf16.msra.mxu0 %v291
    %364 = vmatpush.bf16.msra.mxu0 %v290
    %365 = vmatpush.bf16.msra.mxu0 %v289
    %366 = vmatpush.bf16.msra.mxu0 %v288
    %367 = vmatpush.bf16.msra.mxu0 %v287
    %368 = vmatmul.bf16.gmra.mxu0 %v184
    %v369 = vpop.f32.mrf.mxu0
    %v370 = vadd.f32 %v321, %v369
    %v371 = vpop.f32.mrf.mxu0
    %v372 = vadd.f32 %v323, %v371
    %373 = vmatmul.bf16.gmra.mxu0 %v186
    %v374 = vpop.f32.mrf.mxu0
    %v375 = vadd.f32 %v326, %v374
    %v376 = vpop.f32.mrf.mxu0
    %v377 = vadd.f32 %v328, %v376
    %378 = vmatmul.bf16.gmra.mxu0 %v188
    %v379 = vpop.f32.mrf.mxu0
    %v380 = vadd.f32 %v331, %v379
    %v381 = vpop.f32.mrf.mxu0
    %v382 = vadd.f32 %v333, %v381
    %383 = vmatmul.bf16.gmra.mxu0 %v190
    %v384 = vpop.f32.mrf.mxu0
    %v385 = vadd.f32 %v336, %v384
    %v386 = vpop.f32.mrf.mxu0
    %v387 = vadd.f32 %v338, %v386
    %388 = vmatmul.bf16.gmra.mxu0 %v192
    %v389 = vpop.f32.mrf.mxu0
    %v390 = vadd.f32 %v341, %v389
    %v391 = vpop.f32.mrf.mxu0
    %v392 = vadd.f32 %v343, %v391
    %393 = vmatmul.bf16.gmra.mxu0 %v194
    %v394 = vpop.f32.mrf.mxu0
    %v395 = vadd.f32 %v346, %v394
    %v396 = vpop.f32.mrf.mxu0
    %v397 = vadd.f32 %v348, %v396
    %398 = vmatmul.bf16.gmra.mxu0 %v196
    %v399 = vpop.f32.mrf.mxu0
    %v400 = vadd.f32 %v351, %v399
    %v401 = vpop.f32.mrf.mxu0
    %v402 = vadd.f32 %v353, %v401
    %403 = vmatmul.bf16.gmra.mxu0 %v198
    %v404 = vpop.f32.mrf.mxu0
    %v405 = vadd.f32 %v356, %v404
    %v406 = vpop.f32.mrf.mxu0
    %v407 = vadd.f32 %v358, %v406
    %408 = vdwg.mxu0
    %v409 = vadd.f32 %v71, %v370
    %v410 = vadd.f32 %v72, %v372
    %v411 = vadd.f32 %v73, %v375
    %v412 = vadd.f32 %v74, %v377
    %v413 = vadd.f32 %v75, %v380
    %v414 = vadd.f32 %v76, %v382
    %v415 = vadd.f32 %v77, %v385
    %v416 = vadd.f32 %v78, %v387
    %v417 = vadd.f32 %v79, %v390
    %v418 = vadd.f32 %v80, %v392
    %v419 = vadd.f32 %v81, %v395
    %v420 = vadd.f32 %v82, %v397
    %v421 = vadd.f32 %v83, %v400
    %v422 = vadd.f32 %v84, %v402
    %v423 = vadd.f32 %v85, %v405
    %v424 = vadd.f32 %v86, %v407
    %425 = vst [vmem:[#allocation2] sm:$0xff] %v409
    %426 = vst [vmem:[#allocation2 + $0x8] sm:$0xff] %v410
    %427 = vst [vmem:[#allocation2 + $0x10] sm:$0xff] %v411
    %428 = vst [vmem:[#allocation2 + $0x18] sm:$0xff] %v412
    %429 = vst [vmem:[#allocation2 + $0x20] sm:$0xff] %v413
    %430 = vst [vmem:[#allocation2 + $0x28] sm:$0xff] %v414
    %431 = vst [vmem:[#allocation2 + $0x30] sm:$0xff] %v415
    %432 = vst [vmem:[#allocation2 + $0x38] sm:$0xff] %v416
    %433 = vst [vmem:[#allocation2 + $0x40] sm:$0xff] %v417
    %434 = vst [vmem:[#allocation2 + $0x48] sm:$0xff] %v418
    %435 = vst [vmem:[#allocation2 + $0x50] sm:$0xff] %v419
    %436 = vst [vmem:[#allocation2 + $0x58] sm:$0xff] %v420
    %437 = vst [vmem:[#allocation2 + $0x60] sm:$0xff] %v421
    %438 = vst [vmem:[#allocation2 + $0x68] sm:$0xff] %v422
    %439 = vst [vmem:[#allocation2 + $0x70] sm:$0xff] %v423
    %440 = vst [vmem:[#allocation2 + $0x78] sm:$0xff] %v424
    // Predicated region
    $region26: #{tpu_custom_call.1} parent=1 // pred_check
      %p441 = pneg %p51
    $region27: #{tpu_custom_call.1} parent=1 // pred_check_branch
      %443 = sbr.rel (%p441) target = $region29
    $region28: #{tpu_custom_call.1} parent=1 // pred_region
      %v444 = vld [vmem:[#allocation2] sm:$0xff]
      %v445 = vld [vmem:[#allocation2 + $0x8] sm:$0xff]
      %v446 = vld [vmem:[#allocation2 + $0x10] sm:$0xff]
      %v447 = vld [vmem:[#allocation2 + $0x18] sm:$0xff]
      %v448 = vld [vmem:[#allocation2 + $0x20] sm:$0xff]
      %v449 = vld [vmem:[#allocation2 + $0x28] sm:$0xff]
      %v450 = vld [vmem:[#allocation2 + $0x30] sm:$0xff]
      %v451 = vld [vmem:[#allocation2 + $0x38] sm:$0xff]
      %v452 = vld [vmem:[#allocation2 + $0x40] sm:$0xff]
      %v453 = vld [vmem:[#allocation2 + $0x48] sm:$0xff]
      %v454 = vld [vmem:[#allocation2 + $0x50] sm:$0xff]
      %v455 = vld [vmem:[#allocation2 + $0x58] sm:$0xff]
      %v456 = vld [vmem:[#allocation2 + $0x60] sm:$0xff]
      %v457 = vld [vmem:[#allocation2 + $0x68] sm:$0xff]
      %v458 = vld [vmem:[#allocation2 + $0x70] sm:$0xff]
      %v459 = vld [vmem:[#allocation2 + $0x78] sm:$0xff]
      %v460 = vld [vmem:[%s2] sm:$0x1]
      %v462 = vperm.slane %v460, 0
      %v464 = vadd.f32 %v444, %v462
      %v465 = vadd.f32 %v445, %v462
      %v466 = vadd.f32 %v446, %v462
      %v467 = vadd.f32 %v447, %v462
      %v468 = vadd.f32 %v448, %v462
      %v469 = vadd.f32 %v449, %v462
      %v470 = vadd.f32 %v450, %v462
      %v471 = vadd.f32 %v451, %v462
      %v472 = vadd.f32 %v452, %v462
      %v473 = vadd.f32 %v453, %v462
      %v474 = vadd.f32 %v454, %v462
      %v475 = vadd.f32 %v455, %v462
      %v476 = vadd.f32 %v456, %v462
      %v477 = vadd.f32 %v457, %v462
      %v478 = vadd.f32 %v458, %v462
      %v479 = vadd.f32 %v459, %v462
      %v480 = vpack.c.bf16 %v464, %v464
      %v481 = vpack.c.bf16 %v465, %v465
      %v482 = vpack.c.bf16 %v466, %v466
      %v483 = vpack.c.bf16 %v467, %v467
      %v484 = vpack.c.bf16 %v468, %v468
      %v485 = vpack.c.bf16 %v469, %v469
      %v486 = vpack.c.bf16 %v470, %v470
      %v487 = vpack.c.bf16 %v471, %v471
      %v488 = vpack.c.bf16 %v472, %v472
      %v489 = vpack.c.bf16 %v473, %v473
      %v490 = vpack.c.bf16 %v474, %v474
      %v491 = vpack.c.bf16 %v475, %v475
      %v492 = vpack.c.bf16 %v476, %v476
      %v493 = vpack.c.bf16 %v477, %v477
      %v494 = vpack.c.bf16 %v478, %v478
      %v495 = vpack.c.bf16 %v479, %v479
      %496 = vst [vmem:[#allocation8] sm:$0xf] %v480
      %497 = vst [vmem:[#allocation8 + $0x4] sm:$0xf] %v481
      %498 = vst [vmem:[#allocation8 + $0x8] sm:$0xf] %v482
      %499 = vst [vmem:[#allocation8 + $0xc] sm:$0xf] %v483
      %500 = vst [vmem:[#allocation8 + $0x10] sm:$0xf] %v484
      %501 = vst [vmem:[#allocation8 + $0x14] sm:$0xf] %v485
      %502 = vst [vmem:[#allocation8 + $0x18] sm:$0xf] %v486
      %503 = vst [vmem:[#allocation8 + $0x1c] sm:$0xf] %v487
      %504 = vst [vmem:[#allocation8 + $0x20] sm:$0xf] %v488
      %505 = vst [vmem:[#allocation8 + $0x24] sm:$0xf] %v489
      %506 = vst [vmem:[#allocation8 + $0x28] sm:$0xf] %v490
      %507 = vst [vmem:[#allocation8 + $0x2c] sm:$0xf] %v491
      %508 = vst [vmem:[#allocation8 + $0x30] sm:$0xf] %v492
      %509 = vst [vmem:[#allocation8 + $0x34] sm:$0xf] %v493
      %510 = vst [vmem:[#allocation8 + $0x38] sm:$0xf] %v494
      %511 = vst [vmem:[#allocation8 + $0x3c] sm:$0xf] %v495
      %v512 = vadd.f32 %v464, %v465
      %v513 = vadd.f32 %v512, %v466
      %v514 = vadd.f32 %v513, %v467
      %v515 = vadd.f32 %v514, %v468
      %v516 = vadd.f32 %v515, %v469
      %v517 = vadd.f32 %v516, %v470
      %v518 = vadd.f32 %v517, %v471
      %v519 = vadd.f32 %v518, %v472
      %v520 = vadd.f32 %v519, %v473
      %v521 = vadd.f32 %v520, %v474
      %v522 = vadd.f32 %v521, %v475
      %v523 = vadd.f32 %v522, %v476
      %v524 = vadd.f32 %v523, %v477
      %v525 = vadd.f32 %v524, %v478
      %v526 = vadd.f32 %v525, %v479
      %v527 = vrot.slane %v526, 4
      %v528 = vadd.f32 %v526, %v527
      %v529 = vrot.slane %v528, 2
      %v530 = vadd.f32 %v528, %v529
      %v531 = vrot.slane %v530, 1
      %v532 = vadd.f32 %v530, %v531
      %533 = vst [vmem:[#allocation9] sm:$0x1] %v532
      %v534 = vmul.f32 %v464, %v464
      %v535 = vmul.f32 %v465, %v465
      %v536 = vmul.f32 %v466, %v466
      %v537 = vmul.f32 %v467, %v467
      %v538 = vmul.f32 %v468, %v468
      %v539 = vmul.f32 %v469, %v469
      %v540 = vmul.f32 %v470, %v470
      %v541 = vmul.f32 %v471, %v471
      %v542 = vmul.f32 %v472, %v472
      %v543 = vmul.f32 %v473, %v473
      %v544 = vmul.f32 %v474, %v474
      %v545 = vmul.f32 %v475, %v475
      %v546 = vmul.f32 %v476, %v476
      %v547 = vmul.f32 %v477, %v477
      %v548 = vmul.f32 %v478, %v478
      %v549 = vmul.f32 %v479, %v479
      %v550 = vadd.f32 %v534, %v535
      %v551 = vadd.f32 %v550, %v536
      %v552 = vadd.f32 %v551, %v537
      %v553 = vadd.f32 %v552, %v538
      %v554 = vadd.f32 %v553, %v539
      %v555 = vadd.f32 %v554, %v540
      %v556 = vadd.f32 %v555, %v541
      %v557 = vadd.f32 %v556, %v542
      %v558 = vadd.f32 %v557, %v543
      %v559 = vadd.f32 %v558, %v544
      %v560 = vadd.f32 %v559, %v545
      %v561 = vadd.f32 %v560, %v546
      %v562 = vadd.f32 %v561, %v547
      %v563 = vadd.f32 %v562, %v548
      %v564 = vadd.f32 %v563, %v549
      %v565 = vrot.slane %v564, 4
      %v566 = vadd.f32 %v564, %v565
      %v567 = vrot.slane %v566, 2
      %v568 = vadd.f32 %v566, %v567
      %v569 = vrot.slane %v568, 1
      %v570 = vadd.f32 %v568, %v569
      %571 = vst [vmem:[#allocation11] sm:$0x1] %v570
    $region29: #{tpu_custom_call.1} parent=1 // pred_fallthru
      _
    // Predicated region
    $region30: #{tpu_custom_call.1} parent=1 // pred_check
      _
    $region31: #{tpu_custom_call.1} parent=1 // pred_check_branch
      %573 = sbr.rel (0) target = $region33
    $region32: #{tpu_custom_call.1} parent=1 // pred_region
      %575 = vsyncadd [#allocation5], 0
      %s576 = sshll.u32 [#allocation8], 4
      %s577 = int_to_ptr.vmem [resolvable:$true] %s576
      %s578 = sshll.u32 %s3, 4
      %s579 = int_to_ptr.hbm [resolvable:$true] %s578
      %584 = dma.vmem_to_hbm [thread:$0]  %s577, 1024, %s579, [#allocation5], 64, 64, 4
    $region33: #{tpu_custom_call.1} parent=1 // pred_fallthru
      _
    // Predicated region
    $region34: #{tpu_custom_call.1} parent=1 // pred_check
      _
    $region35: #{tpu_custom_call.1} parent=1 // pred_check_branch
      %586 = sbr.rel (0) target = $region37
    $region36: #{tpu_custom_call.1} parent=1 // pred_region
      %588 = vsyncadd [#allocation10], 0
      %s590 = sshll.u32 [#allocation9], 4
      %s591 = int_to_ptr.vmem [resolvable:$true] %s590
      %s592 = sshll.u32 %s4, 4
      %s593 = int_to_ptr.hbm [resolvable:$true] %s592
      %595 = dma.vmem_to_hbm [thread:$0]  %s591, 16, %s593, [#allocation10]
    $region37: #{tpu_custom_call.1} parent=1 // pred_fallthru
      _
    // Predicated region
    $region38: #{tpu_custom_call.1} parent=1 // pred_check
      _
    $region39: #{tpu_custom_call.1} parent=1 // pred_check_branch
      %597 = sbr.rel (0) target = $region41
    $region40: #{tpu_custom_call.1} parent=1 // pred_region
      %599 = vsyncadd [#allocation10], 0
      %s601 = sshll.u32 [#allocation11], 4
      %s602 = int_to_ptr.vmem [resolvable:$true] %s601
      %s603 = sshll.u32 %s5, 4
      %s604 = int_to_ptr.hbm [resolvable:$true] %s603
      %606 = dma.vmem_to_hbm [thread:$0]  %s602, 16, %s604, [#allocation10]
    $region41: #{tpu_custom_call.1} parent=1 // pred_fallthru
      _
    // Predicated region
    $region42: #{tpu_custom_call.1} parent=1 // pred_check
      _
    $region43: #{tpu_custom_call.1} parent=1 // pred_check_branch
      %608 = sbr.rel (0) target = $region45
    $region44: #{tpu_custom_call.1} parent=1 // pred_region
      %610 = dma.done [#allocation5], 1024
    $region45: #{tpu_custom_call.1} parent=1 // pred_fallthru
      _
    // Predicated region
    $region46: #{tpu_custom_call.1} parent=1 // pred_check
      _
    $region47: #{tpu_custom_call.1} parent=1 // pred_check_branch
      %612 = sbr.rel (0) target = $region49
    $region48: #{tpu_custom_call.1} parent=1 // pred_region
      %614 = dma.done [#allocation10], 16
    $region49: #{tpu_custom_call.1} parent=1 // pred_fallthru
      _
    // Predicated region
    $region50: #{tpu_custom_call.1} parent=1 // pred_check
      _
    $region51: #{tpu_custom_call.1} parent=1 // pred_check_branch
      %616 = sbr.rel (0) target = $region53
    $region52: #{tpu_custom_call.1} parent=1 // pred_region
      %618 = dma.done [#allocation10], 16
    $region53: #{tpu_custom_call.1} parent=1 // pred_fallthru
      _
    %619 = vsyncpa [#allocation4], 1
    %620 = vsyncpa [#allocation7], 1
    %621 = vsyncpa [#allocation5], 1
    %622 = vsyncpa [#allocation10], 1

</llo_original>
